<compile_context>
chip_gen: v7x
topology: tpu7x:2x2x1
jax: 0.10.0
libtpu: 0.0.40
codegen_flags: <defaults>
</compile_context>

<pallas_src>
import functools

import jax
import jax.numpy as jnp
from jax.experimental import pallas as pl
from jax.experimental.pallas import tpu as pltpu


def _round_up(x, m):
    return (x + m - 1) // m * m


def _lm_head_kernel(x_ref, w1_ref, b1_ref, g_ref, beta_ref, w2_ref, b2_ref,
                    o_ref, hn_ref, *, eps):
    # dense + gelu + LayerNorm: compute once per M tile (first V tile only),
    # cache the normalized activations (in the MXU compute dtype) in VMEM
    # scratch for all subsequent V tiles.
    @pl.when(pl.program_id(1) == 0)
    def _():
        x = x_ref[...].astype(w1_ref.dtype)
        h = jnp.dot(x, w1_ref[...], preferred_element_type=jnp.float32)
        h = h + b1_ref[...].astype(jnp.float32)
        # exact gelu: 0.5 * x * (1 + erf(x / sqrt(2)))
        h = 0.5 * h * (1.0 + jax.lax.erf(h * (1.0 / jnp.sqrt(2.0))))
        # LayerNorm over last dim (biased variance, like torch.nn.LayerNorm)
        mu = jnp.mean(h, axis=-1, keepdims=True)
        c = h - mu
        var = jnp.mean(c * c, axis=-1, keepdims=True)
        hn = c * jax.lax.rsqrt(var + eps)
        hn = hn * g_ref[...].astype(jnp.float32) + beta_ref[...].astype(jnp.float32)
        hn_ref[...] = hn.astype(hn_ref.dtype)

    # decoder tile: (TM, H) @ (H, TN) + (1, TN); hn already in w2's dtype.
    out = jnp.dot(hn_ref[...], w2_ref[...], preferred_element_type=jnp.float32)
    out = out + b2_ref[...].astype(jnp.float32)
    o_ref[...] = out.astype(o_ref.dtype)


def prepare_lm_head_params(params, *, weight_dtype=jnp.bfloat16):
    """One-time param prep (call OUTSIDE the per-step forward path).

    Casts the two matmul weights to the MXU compute dtype (bf16 by default),
    reshapes biases / LN params to (1, dim) row vectors, and pads the decoder
    weight/bias once to a lane-dense multiple of 128 along V.
    """
    w_dense = params["w_dense"]                       # (H, H), in -> out layout
    w_dec = params["w_dec"]                           # (H, V), in -> out layout
    H = w_dense.shape[0]
    V = w_dec.shape[1]
    Vp = _round_up(V, 128)

    w_dec = w_dec.astype(weight_dtype)
    b_dec = params["b_dec"].reshape(1, V).astype(jnp.float32)
    if Vp != V:
        w_dec = jnp.pad(w_dec, ((0, 0), (0, Vp - V)))
        b_dec = jnp.pad(b_dec, ((0, 0), (0, Vp - V)))

    return {
        "w_dense": w_dense.astype(weight_dtype),
        "b_dense": params["b_dense"].reshape(1, H).astype(jnp.float32),
        "ln_gamma": params["ln_gamma"].reshape(1, H).astype(jnp.float32),
        "ln_beta": params["ln_beta"].reshape(1, H).astype(jnp.float32),
        "w_dec": w_dec,
        "b_dec": b_dec,
        "vocab_size": V,                              # true (unpadded) vocab
    }


def roberta_lm_head(features, prep, *, eps=1e-5, out_dtype=None,
                    tile_m=512, tile_n=2048,
                    vmem_limit_bytes=56 * 1024 * 1024):
    """features: (B, S, H) -> logits: (B, S, V).  `prep` from prepare_lm_head_params."""
    B, S, H = features.shape
    w_dense = prep["w_dense"]
    b_dense = prep["b_dense"]
    gamma = prep["ln_gamma"]
    beta = prep["ln_beta"]
    w_dec = prep["w_dec"]                             # (H, Vp), Vp % 128 == 0
    b_dec = prep["b_dec"]
    V = prep["vocab_size"]
    Vp = w_dec.shape[1]
    out_dtype = features.dtype if out_dtype is None else out_dtype

    M = B * S
    x2d = features.reshape(M, H)

    # --- tile sizes -----------------------------------------------------
    # M tile: multiple of 8; shrink so the parallel M axis has >= 2 tiles
    # (keeps both v7x TensorCores busy for small / decode-style inputs).
    TM = min(tile_m, _round_up(M, 8))
    if M > 8 and -(-M // TM) < 2:
        TM = max(8, _round_up(-(-M // 2), 8))
    Mp = _round_up(M, TM)
    # V tile: lane-dense multiple of 128; a ragged final tile (Vp % TN != 0)
    # is handled by Pallas boundary masking on the last grid step only.
    TN = min(tile_n, Vp)

    if Mp != M:
        x2d = jnp.pad(x2d, ((0, Mp - M), (0, 0)))

    grid = (Mp // TM, pl.cdiv(Vp, TN))

    w_bytes = jnp.dtype(w_dec.dtype).itemsize
    cost = pl.CostEstimate(
        flops=2 * Mp * H * H + 2 * Mp * H * Vp,
        transcendentals=Mp * H,
        bytes_accessed=(
            Mp * H * jnp.dtype(x2d.dtype).itemsize        # features
            + H * H * w_bytes                             # dense weight
            + grid[0] * H * Vp * w_bytes                  # decoder weight, re-streamed per M tile
            + Mp * Vp * jnp.dtype(out_dtype).itemsize     # logits writeback
        ),
    )

    kernel = functools.partial(_lm_head_kernel, eps=eps)

    out2d = pl.pallas_call(
        kernel,
        out_shape=jax.ShapeDtypeStruct((Mp, Vp), out_dtype),
        grid_spec=pltpu.PrefetchScalarGridSpec(
            num_scalar_prefetch=0,
            grid=grid,
            in_specs=[
                pl.BlockSpec((TM, H), lambda i, j: (i, 0)),   # features tile
                pl.BlockSpec((H, H), lambda i, j: (0, 0)),    # dense weight (resident)
                pl.BlockSpec((1, H), lambda i, j: (0, 0)),    # dense bias
                pl.BlockSpec((1, H), lambda i, j: (0, 0)),    # layernorm gamma
                pl.BlockSpec((1, H), lambda i, j: (0, 0)),    # layernorm beta
                pl.BlockSpec((H, TN), lambda i, j: (0, j)),   # decoder weight tile (dominant stream)
                pl.BlockSpec((1, TN), lambda i, j: (0, j)),   # decoder bias tile
            ],
            out_specs=pl.BlockSpec((TM, TN), lambda i, j: (i, j)),
            # hn cached per M tile, stored in the MXU compute dtype (bf16).
            scratch_shapes=[pltpu.VMEM((TM, H), w_dec.dtype)],
        ),
        compiler_params=pltpu.CompilerParams(
            dimension_semantics=("parallel", "arbitrary"),
            vmem_limit_bytes=vmem_limit_bytes,
        ),
        cost_estimate=cost,
    )(x2d, w_dense, b_dense, gamma, beta, w_dec, b_dec)

    # Only slice (a full-logits HBM copy) if something was actually padded.
    out = out2d if (Mp == M and Vp == V) else out2d[:M, :V]
    return out.reshape(B, S, V)


def _reference(features, params, eps=1e-5):
    x = features.astype(jnp.float32)
    h = x @ params["w_dense"] + params["b_dense"]
    h = 0.5 * h * (1.0 + jax.lax.erf(h / jnp.sqrt(2.0)))
    mu = jnp.mean(h, axis=-1, keepdims=True)
    var = jnp.mean((h - mu) ** 2, axis=-1, keepdims=True)
    hn = (h - mu) / jnp.sqrt(var + eps)
    hn = hn * params["ln_gamma"] + params["ln_beta"]
    return hn @ params["w_dec"] + params["b_dec"]


if __name__ == "__main__":
    # Small config: batch=2, seq=8, hidden=32, vocab=64
    B, S, H, V = 2, 8, 32, 64
    eps = 1e-5

    key = jax.random.PRNGKey(0)
    k_feat, k_w1, k_b1, k_g, k_bt, k_w2 = jax.random.split(key, 6)

    features = jax.random.normal(k_feat, (B, S, H), dtype=jnp.float32)
    params = {
        "w_dense": jax.random.normal(k_w1, (H, H), dtype=jnp.float32) * 0.05,
        "b_dense": jax.random.normal(k_b1, (1, H), dtype=jnp.float32) * 0.05,
        "ln_gamma": jnp.ones((1, H), dtype=jnp.float32)
        + 0.01 * jax.random.normal(k_g, (1, H), dtype=jnp.float32),
        "ln_beta": 0.01 * jax.random.normal(k_bt, (1, H), dtype=jnp.float32),
        "w_dec": jax.random.normal(k_w2, (H, V), dtype=jnp.float32) * 0.05,
        # decoder.bias = self.bias = zeros(vocab), as in the module __init__
        "b_dec": jnp.zeros((1, V), dtype=jnp.float32),
    }

    # One-time prep: bf16 matmul weights, lane-dense padding (outside forward path).
    prep = prepare_lm_head_params(params)

    out = roberta_lm_head(features, prep, eps=eps, out_dtype=jnp.float32)
    out = jax.block_until_ready(out)

    # Reference with bf16-rounded weights (matches the kernel's MXU dtype) so
    # the comparison isolates kernel correctness from quantization choice.
    params_ref = dict(params)
    params_ref["w_dense"] = params["w_dense"].astype(jnp.bfloat16).astype(jnp.float32)
    params_ref["w_dec"] = params["w_dec"].astype(jnp.bfloat16).astype(jnp.float32)
    ref = _reference(features, params_ref, eps=eps).reshape(B, S, V)

    assert out.shape == (B, S, V), out.shape
    max_err = float(jnp.max(jnp.abs(out - ref)))
    assert jnp.allclose(out, ref, atol=2e-2, rtol=2e-2), max_err

    print("KERNEL_OK")
</pallas_src>

<mosaic_0001>
module attributes {stable_mosaic.version = 11 : i64} {
  func.func @_lm_head_kernel(%arg0: i32, %arg1: i32, %arg2: memref<8x32xf32, #tpu.memory_space<vmem>>, %arg3: memref<32x32xbf16, #tpu.memory_space<vmem>>, %arg4: memref<1x32xf32, #tpu.memory_space<vmem>>, %arg5: memref<1x32xf32, #tpu.memory_space<vmem>>, %arg6: memref<1x32xf32, #tpu.memory_space<vmem>>, %arg7: memref<32x128xbf16, #tpu.memory_space<vmem>>, %arg8: memref<1x128xf32, #tpu.memory_space<vmem>>, %arg9: memref<8x128xf32, #tpu.memory_space<vmem>>, %arg10: memref<8x32xbf16, #tpu.memory_space<vmem>>) attributes {dimension_semantics = [#tpu.dimension_semantics<parallel>, #tpu.dimension_semantics<arbitrary>], iteration_bounds = array<i64: 2, 1>, scalar_prefetch = 0 : i64, scratch_operands = 1 : i64, tpu.core_type = #tpu.core_type<tc>, window_params = [{transform_indices = @transform_0, window_bounds = array<i64: 8, 32>}, {pipeline_mode = #tpu.pipeline_mode<synchronous>, transform_indices = @transform_1, window_bounds = array<i64: 32, 32>}, {pipeline_mode = #tpu.pipeline_mode<synchronous>, transform_indices = @transform_2, window_bounds = array<i64: 1, 32>}, {pipeline_mode = #tpu.pipeline_mode<synchronous>, transform_indices = @transform_3, window_bounds = array<i64: 1, 32>}, {pipeline_mode = #tpu.pipeline_mode<synchronous>, transform_indices = @transform_4, window_bounds = array<i64: 1, 32>}, {transform_indices = @transform_5, window_bounds = array<i64: 32, 128>}, {transform_indices = @transform_6, window_bounds = array<i64: 1, 128>}, {transform_indices = @transform_7, window_bounds = array<i64: 8, 128>}]} {
    %c0_i32 = arith.constant 0 : i32
    %0 = arith.cmpi eq, %arg1, %c0_i32 : i32
    %1 = arith.extui %0 : i1 to i32
    %c0_i32_0 = arith.constant 0 : i32
    %2 = arith.cmpi ne, %1, %c0_i32_0 : i32
    scf.if %2 {
      %c0_8 = arith.constant 0 : index
      %c0_9 = arith.constant 0 : index
      %10 = vector.load %arg2[%c0_8, %c0_9] : memref<8x32xf32, #tpu.memory_space<vmem>>, vector<8x32xf32>
      %11 = arith.truncf %10 : vector<8x32xf32> to vector<8x32xbf16>
      %c0_10 = arith.constant 0 : index
      %c0_11 = arith.constant 0 : index
      %12 = vector.load %arg3[%c0_10, %c0_11] : memref<32x32xbf16, #tpu.memory_space<vmem>>, vector<32x32xbf16>
      %cst_12 = arith.constant dense<0.000000e+00> : vector<8x32xf32>
      %13 = tpu.matmul %11, %12, %cst_12 {dimension_numbers = #tpu.dot_dimension_numbers<[1], [0], [0], [1], [0, 0, 1, 1], [], []>} : vector<8x32xbf16>, vector<32x32xbf16>, vector<8x32xf32> -> vector<8x32xf32>
      %c0_13 = arith.constant 0 : index
      %c0_14 = arith.constant 0 : index
      %14 = vector.load %arg4[%c0_13, %c0_14] : memref<1x32xf32, #tpu.memory_space<vmem>>, vector<1x32xf32>
      %15 = vector.broadcast %14 : vector<1x32xf32> to vector<8x32xf32>
      %16 = arith.addf %13, %15 : vector<8x32xf32>
      %cst_15 = arith.constant 5.000000e-01 : f32
      %17 = vector.broadcast %cst_15 : f32 to vector<8x32xf32>
      %18 = arith.mulf %17, %16 : vector<8x32xf32>
      %cst_16 = arith.constant 2.000000e+00 : f32
      %19 = math.sqrt %cst_16 : f32
      %cst_17 = arith.constant 1.000000e+00 : f32
      %20 = arith.divf %cst_17, %19 : f32
      %21 = vector.broadcast %20 : f32 to vector<8x32xf32>
      %22 = arith.mulf %16, %21 : vector<8x32xf32>
      %23 = math.erf %22 : vector<8x32xf32>
      %cst_18 = arith.constant 1.000000e+00 : f32
      %24 = vector.broadcast %cst_18 : f32 to vector<8x32xf32>
      %25 = arith.addf %24, %23 : vector<8x32xf32>
      %26 = arith.mulf %18, %25 : vector<8x32xf32>
      %cst_19 = arith.constant dense<0.000000e+00> : vector<8xf32>
      %27 = vector.multi_reduction <add>, %26, %cst_19 [1] : vector<8x32xf32> to vector<8xf32>
      %28 = vector.shape_cast %27 : vector<8xf32> to vector<8x1xf32>
      %cst_20 = arith.constant 3.200000e+01 : f32
      %29 = vector.broadcast %cst_20 : f32 to vector<8x1xf32>
      %30 = arith.divf %28, %29 : vector<8x1xf32>
      %31 = vector.broadcast %30 : vector<8x1xf32> to vector<8x32xf32>
      %32 = arith.subf %26, %31 : vector<8x32xf32>
      %33 = arith.mulf %32, %32 : vector<8x32xf32>
      %cst_21 = arith.constant dense<0.000000e+00> : vector<8xf32>
      %34 = vector.multi_reduction <add>, %33, %cst_21 [1] : vector<8x32xf32> to vector<8xf32>
      %35 = vector.shape_cast %34 : vector<8xf32> to vector<8x1xf32>
      %cst_22 = arith.constant 3.200000e+01 : f32
      %36 = vector.broadcast %cst_22 : f32 to vector<8x1xf32>
      %37 = arith.divf %35, %36 : vector<8x1xf32>
      %cst_23 = arith.constant 9.99999974E-6 : f32
      %38 = vector.broadcast %cst_23 : f32 to vector<8x1xf32>
      %39 = arith.addf %37, %38 : vector<8x1xf32>
      %40 = math.rsqrt %39 : vector<8x1xf32>
      %41 = vector.broadcast %40 : vector<8x1xf32> to vector<8x32xf32>
      %42 = arith.mulf %32, %41 : vector<8x32xf32>
      %c0_24 = arith.constant 0 : index
      %c0_25 = arith.constant 0 : index
      %43 = vector.load %arg5[%c0_24, %c0_25] : memref<1x32xf32, #tpu.memory_space<vmem>>, vector<1x32xf32>
      %44 = vector.broadcast %43 : vector<1x32xf32> to vector<8x32xf32>
      %45 = arith.mulf %42, %44 : vector<8x32xf32>
      %c0_26 = arith.constant 0 : index
      %c0_27 = arith.constant 0 : index
      %46 = vector.load %arg6[%c0_26, %c0_27] : memref<1x32xf32, #tpu.memory_space<vmem>>, vector<1x32xf32>
      %47 = vector.broadcast %46 : vector<1x32xf32> to vector<8x32xf32>
      %48 = arith.addf %45, %47 : vector<8x32xf32>
      %49 = arith.truncf %48 : vector<8x32xf32> to vector<8x32xbf16>
      %c0_28 = arith.constant 0 : index
      %c0_29 = arith.constant 0 : index
      %50 = vector.load %arg10[%c0_28, %c0_29] : memref<8x32xbf16, #tpu.memory_space<vmem>>, vector<8x32xbf16>
      tpu.vector_store %arg10[%c0_28, %c0_29], %49 {strides = array<i32>} : memref<8x32xbf16, #tpu.memory_space<vmem>>, vector<8x32xbf16>,
    } else {
    }
    %c0 = arith.constant 0 : index
    %c0_1 = arith.constant 0 : index
    %3 = vector.load %arg10[%c0, %c0_1] : memref<8x32xbf16, #tpu.memory_space<vmem>>, vector<8x32xbf16>
    %c0_2 = arith.constant 0 : index
    %c0_3 = arith.constant 0 : index
    %4 = vector.load %arg7[%c0_2, %c0_3] : memref<32x128xbf16, #tpu.memory_space<vmem>>, vector<32x128xbf16>
    %cst = arith.constant dense<0.000000e+00> : vector<8x128xf32>
    %5 = tpu.matmul %3, %4, %cst {dimension_numbers = #tpu.dot_dimension_numbers<[1], [0], [0], [1], [0, 0, 1, 1], [], []>} : vector<8x32xbf16>, vector<32x128xbf16>, vector<8x128xf32> -> vector<8x128xf32>
    %c0_4 = arith.constant 0 : index
    %c0_5 = arith.constant 0 : index
    %6 = vector.load %arg8[%c0_4, %c0_5] : memref<1x128xf32, #tpu.memory_space<vmem>>, vector<1x128xf32>
    %7 = vector.broadcast %6 : vector<1x128xf32> to vector<8x128xf32>
    %8 = arith.addf %5, %7 : vector<8x128xf32>
    %c0_6 = arith.constant 0 : index
    %c0_7 = arith.constant 0 : index
    %9 = vector.load %arg9[%c0_6, %c0_7] : memref<8x128xf32, #tpu.memory_space<vmem>>, vector<8x128xf32>
    tpu.vector_store %arg9[%c0_6, %c0_7], %8 {strides = array<i32>} : memref<8x128xf32, #tpu.memory_space<vmem>>, vector<8x128xf32>,
    return
  }
  func.func @transform_0(%arg0: i32, %arg1: i32) -> (i32, i32) {
    %c0_i32 = arith.constant 0 : i32
    %c0_i32_0 = arith.constant 0 : i32
    return %arg0, %c0_i32 : i32, i32
  }
  func.func @transform_1(%arg0: i32, %arg1: i32) -> (i32, i32) {
    %c0_i32 = arith.constant 0 : i32
    %c0_i32_0 = arith.constant 0 : i32
    %c0_i32_1 = arith.constant 0 : i32
    return %c0_i32, %c0_i32_0 : i32, i32
  }
  func.func @transform_2(%arg0: i32, %arg1: i32) -> (i32, i32) {
    %c0_i32 = arith.constant 0 : i32
    %c0_i32_0 = arith.constant 0 : i32
    %c0_i32_1 = arith.constant 0 : i32
    return %c0_i32, %c0_i32_0 : i32, i32
  }
  func.func @transform_3(%arg0: i32, %arg1: i32) -> (i32, i32) {
    %c0_i32 = arith.constant 0 : i32
    %c0_i32_0 = arith.constant 0 : i32
    %c0_i32_1 = arith.constant 0 : i32
    return %c0_i32, %c0_i32_0 : i32, i32
  }
  func.func @transform_4(%arg0: i32, %arg1: i32) -> (i32, i32) {
    %c0_i32 = arith.constant 0 : i32
    %c0_i32_0 = arith.constant 0 : i32
    %c0_i32_1 = arith.constant 0 : i32
    return %c0_i32, %c0_i32_0 : i32, i32
  }
  func.func @transform_5(%arg0: i32, %arg1: i32) -> (i32, i32) {
    %c0_i32 = arith.constant 0 : i32
    %c0_i32_0 = arith.constant 0 : i32
    return %c0_i32, %arg1 : i32, i32
  }
  func.func @transform_6(%arg0: i32, %arg1: i32) -> (i32, i32) {
    %c0_i32 = arith.constant 0 : i32
    %c0_i32_0 = arith.constant 0 : i32
    return %c0_i32, %arg1 : i32, i32
  }
  func.func @transform_7(%arg0: i32, %arg1: i32) -> (i32, i32) {
    %c0_i32 = arith.constant 0 : i32
    return %arg0, %arg1 : i32, i32
  }
}

</mosaic_0001>

<llo_original>
// kernel: tpu_custom_call.1
$region0: #{tpu_custom_call.1}
  #allocation0 [shape = 'u32[]', space=smem, size = 0x4, offset = 0x4, fixed_abs, tag = 'smem constant byte address 0x4 - core index']
  #allocation1 [shape = 'u32[144,128]{1,0:T(1,128)}', space=vmem, size = 0x12000, scoped, tag = 'internal scratch']
  #allocation2 [shape = 'bf16[8,32]{1,0:T(8,128)(2,1)}', space=vmem, size = 0x800, scoped, tag = 'scratch operand']
  %s0 = inlined_call_operand.hbm [shape: f32[16,32], index: 0, kind: input, shape index: {}]
  %s1 = inlined_call_operand.hbm [shape: bf16[32,32], index: 1, kind: input, shape index: {}]
  %s2 = inlined_call_operand.vmem [shape: f32[1,32], index: 2, kind: input, shape index: {}]
  %s3 = inlined_call_operand.vmem [shape: f32[1,32], index: 3, kind: input, shape index: {}]
  %s4 = inlined_call_operand.hbm [shape: f32[1,32], index: 4, kind: input, shape index: {}]
  %s5 = inlined_call_operand.vmem [shape: bf16[32,128], index: 5, kind: input, shape index: {}]
  %s6 = inlined_call_operand.vmem [shape: f32[1,128], index: 6, kind: input, shape index: {}]
  %s7 = inlined_call_operand.hbm [shape: f32[16,128], index: 7, kind: output, shape index: {}]
  %s8 = sld [smem:[#allocation0]]
  $region77: #{tpu_custom_call.1} parent=0
    _
  %s10 = ssub.s32 1, %s8
  %s11 = scalar_select 0, %s10, %s8
  $region1: #{tpu_custom_call.1} parent=0
    #allocation3 [shape = 'u8[8192]{0}', space=vmem, size = 0x2000, scoped, tag = 'input window, operand 0']
    #allocation4 [shape = 's32[2]{0}', space=sflag, size = 0x8, scoped, tag = 'scoped memory for tpu_custom_call.1']
    #allocation5 [shape = 's32[2]{0}', space=sflag, size = 0x8, scoped, tag = 'scoped memory for tpu_custom_call.1']
    #allocation6 [shape = 'u8[8192]{0}', space=vmem, size = 0x2000, scoped, tag = 'input window, operand 1, single buffered']
    #allocation7 [shape = 's32[1]{0}', space=sflag, size = 0x4, scoped, tag = 'scoped memory for tpu_custom_call.1']
    #allocation8 [shape = 'u8[512]{0}', space=vmem, size = 0x400, scoped, tag = 'input window, operand 4, single buffered']
    #allocation9 [shape = 'u8[8192]{0}', space=vmem, size = 0x2000, scoped, tag = 'output window, operand 0']
    %12 = vsyncpa [#allocation4], 0
    %s13 = scalar_lea.sflag [#allocation4], 1
    %14 = vsyncpa %s13, 0
    %15 = vsyncpa [#allocation7], 0
    %16 = vsyncpa [#allocation5], 0
    %s17 = scalar_lea.sflag [#allocation5], 1
    %18 = vsyncpa %s17, 0
    loop: start=0, step=1, limit=4
    $region2: #{tpu_custom_call.1} parent=1 // loop_pre_header
      _
    $region3: #{tpu_custom_call.1} parent=1 // loop_header
      %s20 = sphi 0, %s24
      %p21 = scmp.ge.s32.totalorder %s20, 4
      %s27 = sphi 0, %s39
      %s28 = sphi 0, %s35
      %s29 = sphi 0, %s27
      %s30 = sphi 0, %s28
      %s31 = sphi 0, %s29
      %s32 = sphi 0, %s30
      %s42 = sphi 0, %s44
      %s45 = sphi 0, %s42
      %s46 = sphi 0, %s45
      %s62 = sphi 0, %s46
      %s66 = sphi 0, %s66
      %s68 = sphi 0, %s66
      %s69 = sphi 0, %s68
      %s83 = sphi 0, %s69
      %s87 = sphi 0, %s87
      %s89 = sphi 0, %s87
      %s90 = sphi 0, %s89
      %s104 = sphi 0, %s90
      %s108 = sphi 0, %s108
      %s110 = sphi 0, %s108
      %s111 = sphi 0, %s110
      %s125 = sphi 0, %s111
      %s129 = sphi 0, %s129
      %s131 = sphi 0, %s129
      %s132 = sphi 0, %s131
      %s146 = sphi 0, %s132
      %s152 = sphi 0, %s154
      %s155 = sphi 0, %s152
      %s156 = sphi 0, %s155
      %s172 = sphi 0, %s156
      %s178 = sphi 0, %s180
      %s181 = sphi 0, %s178
      %s182 = sphi 0, %s181
      %s198 = sphi 0, %s182
      %s206 = sphi 0, %s208
      %s209 = sphi 0, %s206
      %s210 = sphi 0, %s209
      %s226 = sphi 0, %s210
    $region4: #{tpu_custom_call.1} parent=1 // loop_header_branch
      %23 = sbr.rel (%p21) target = $region8
    $region5: #{tpu_custom_call.1} parent=1 // loop_body
      %s25 = ssub.s32 %s20, 1
      %s26 = ssub.s32 %s20, 2
      %s33 = sadd.s32 1, %s28
      %p34 = scmp.ge.s32.totalorder %s33, 1
      %s35 = scalar_select %p34, 0, %s33
      %s36 = sadd.s32 1, %s27
      %s37 = scalar_select %p34, %s36, %s27
      %p38 = scmp.ge.s32.totalorder %s37, 2
      %s39 = scalar_select %p38, 0, %s37
      %s40 = ssub.s32 %s27, %s39
      %p41 = scmp.eq.s32.totalorder %s40, 0
      %s43 = sadd.s32 %s42, 1
      %s44 = scalar_select %p41, %s42, %s43
      %p47 = pneg %p41
      %p48 = scmp.eq.s32.totalorder %s20, 1
      %p49 = por %p47, %p48
      %p50 = scmp.ne.s32.totalorder %s42, %s45
      %p51 = scmp.eq.s32.totalorder %s20, 0
      %p52 = por %p50, %p51
      %p53 = scmp.ne.s32.totalorder %s42, %s45
      %p54 = scmp.eq.s32.totalorder %s25, 1
      %p55 = por %p53, %p54
      %p56 = scmp.ne.s32.totalorder %s45, %s46
      %p57 = scmp.eq.s32.totalorder %s25, 0
      %p58 = por %p56, %p57
      %p59 = scmp.ne.s32.totalorder %s45, %s46
      %p60 = scmp.eq.s32.totalorder %s26, 1
      %p61 = por %p59, %p60
      %p63 = scmp.ne.s32.totalorder %s46, %s62
      %p64 = scmp.eq.s32.totalorder %s26, 0
      %p65 = por %p63, %p64
      %s67 = sadd.s32 %s66, 1
      %p70 = scmp.eq.s32.totalorder %s20, 1
      %p71 = scmp.ne.s32.totalorder %s66, %s68
      %p72 = scmp.eq.s32.totalorder %s20, 0
      %p73 = por %p71, %p72
      %p74 = scmp.ne.s32.totalorder %s66, %s68
      %p75 = scmp.eq.s32.totalorder %s25, 1
      %p76 = por %p74, %p75
      %p77 = scmp.ne.s32.totalorder %s68, %s69
      %p78 = scmp.eq.s32.totalorder %s25, 0
      %p79 = por %p77, %p78
      %p80 = scmp.ne.s32.totalorder %s68, %s69
      %p81 = scmp.eq.s32.totalorder %s26, 1
      %p82 = por %p80, %p81
      %p84 = scmp.ne.s32.totalorder %s69, %s83
      %p85 = scmp.eq.s32.totalorder %s26, 0
      %p86 = por %p84, %p85
      %s88 = sadd.s32 %s87, 1
      %p91 = scmp.eq.s32.totalorder %s20, 1
      %p92 = scmp.ne.s32.totalorder %s87, %s89
      %p93 = scmp.eq.s32.totalorder %s20, 0
      %p94 = por %p92, %p93
      %p95 = scmp.ne.s32.totalorder %s87, %s89
      %p96 = scmp.eq.s32.totalorder %s25, 1
      %p97 = por %p95, %p96
      %p98 = scmp.ne.s32.totalorder %s89, %s90
      %p99 = scmp.eq.s32.totalorder %s25, 0
      %p100 = por %p98, %p99
      %p101 = scmp.ne.s32.totalorder %s89, %s90
      %p102 = scmp.eq.s32.totalorder %s26, 1
      %p103 = por %p101, %p102
      %p105 = scmp.ne.s32.totalorder %s90, %s104
      %p106 = scmp.eq.s32.totalorder %s26, 0
      %p107 = por %p105, %p106
      %s109 = sadd.s32 %s108, 1
      %p112 = scmp.eq.s32.totalorder %s20, 1
      %p113 = scmp.ne.s32.totalorder %s108, %s110
      %p114 = scmp.eq.s32.totalorder %s20, 0
      %p115 = por %p113, %p114
      %p116 = scmp.ne.s32.totalorder %s108, %s110
      %p117 = scmp.eq.s32.totalorder %s25, 1
      %p118 = por %p116, %p117
      %p119 = scmp.ne.s32.totalorder %s110, %s111
      %p120 = scmp.eq.s32.totalorder %s25, 0
      %p121 = por %p119, %p120
      %p122 = scmp.ne.s32.totalorder %s110, %s111
      %p123 = scmp.eq.s32.totalorder %s26, 1
      %p124 = por %p122, %p123
      %p126 = scmp.ne.s32.totalorder %s111, %s125
      %p127 = scmp.eq.s32.totalorder %s26, 0
      %p128 = por %p126, %p127
      %s130 = sadd.s32 %s129, 1
      %p133 = scmp.eq.s32.totalorder %s20, 1
      %p134 = scmp.ne.s32.totalorder %s129, %s131
      %p135 = scmp.eq.s32.totalorder %s20, 0
      %p136 = por %p134, %p135
      %p137 = scmp.ne.s32.totalorder %s129, %s131
      %p138 = scmp.eq.s32.totalorder %s25, 1
      %p139 = por %p137, %p138
      %p140 = scmp.ne.s32.totalorder %s131, %s132
      %p141 = scmp.eq.s32.totalorder %s25, 0
      %p142 = por %p140, %p141
      %p143 = scmp.ne.s32.totalorder %s131, %s132
      %p144 = scmp.eq.s32.totalorder %s26, 1
      %p145 = por %p143, %p144
      %p147 = scmp.ne.s32.totalorder %s132, %s146
      %p148 = scmp.eq.s32.totalorder %s26, 0
      %p149 = por %p147, %p148
      %s150 = ssub.s32 %s28, %s35
      %p151 = scmp.eq.s32.totalorder %s150, 0
      %s153 = sadd.s32 %s152, 1
      %s154 = scalar_select %p151, %s152, %s153
      %p157 = pneg %p151
      %p158 = scmp.eq.s32.totalorder %s20, 1
      %p159 = por %p157, %p158
      %p160 = scmp.ne.s32.totalorder %s152, %s155
      %p161 = scmp.eq.s32.totalorder %s20, 0
      %p162 = por %p160, %p161
      %p163 = scmp.ne.s32.totalorder %s152, %s155
      %p164 = scmp.eq.s32.totalorder %s25, 1
      %p165 = por %p163, %p164
      %p166 = scmp.ne.s32.totalorder %s155, %s156
      %p167 = scmp.eq.s32.totalorder %s25, 0
      %p168 = por %p166, %p167
      %p169 = scmp.ne.s32.totalorder %s155, %s156
      %p170 = scmp.eq.s32.totalorder %s26, 1
      %p171 = por %p169, %p170
      %p173 = scmp.ne.s32.totalorder %s156, %s172
      %p174 = scmp.eq.s32.totalorder %s26, 0
      %p175 = por %p173, %p174
      %s176 = ssub.s32 %s28, %s35
      %p177 = scmp.eq.s32.totalorder %s176, 0
      %s179 = sadd.s32 %s178, 1
      %s180 = scalar_select %p177, %s178, %s179
      %p183 = pneg %p177
      %p184 = scmp.eq.s32.totalorder %s20, 1
      %p185 = por %p183, %p184
      %p186 = scmp.ne.s32.totalorder %s178, %s181
      %p187 = scmp.eq.s32.totalorder %s20, 0
      %p188 = por %p186, %p187
      %p189 = scmp.ne.s32.totalorder %s178, %s181
      %p190 = scmp.eq.s32.totalorder %s25, 1
      %p191 = por %p189, %p190
      %p192 = scmp.ne.s32.totalorder %s181, %s182
      %p193 = scmp.eq.s32.totalorder %s25, 0
      %p194 = por %p192, %p193
      %p195 = scmp.ne.s32.totalorder %s181, %s182
      %p196 = scmp.eq.s32.totalorder %s26, 1
      %p197 = por %p195, %p196
      %p199 = scmp.ne.s32.totalorder %s182, %s198
      %p200 = scmp.eq.s32.totalorder %s26, 0
      %p201 = por %p199, %p200
      %s202 = ssub.s32 %s27, %s39
      %s203 = ssub.s32 %s28, %s35
      %s204 = sor.u32 %s202, %s203
      %p205 = scmp.eq.s32.totalorder %s204, 0
      %s207 = sadd.s32 %s206, 1
      %s208 = scalar_select %p205, %s206, %s207
      %p211 = pneg %p205
      %p212 = scmp.eq.s32.totalorder %s20, 1
      %p213 = por %p211, %p212
      %p214 = scmp.ne.s32.totalorder %s206, %s209
      %p215 = scmp.eq.s32.totalorder %s20, 0
      %p216 = por %p214, %p215
      %p217 = scmp.ne.s32.totalorder %s206, %s209
      %p218 = scmp.eq.s32.totalorder %s25, 1
      %p219 = por %p217, %p218
      %p220 = scmp.ne.s32.totalorder %s209, %s210
      %p221 = scmp.eq.s32.totalorder %s25, 0
      %p222 = por %p220, %p221
      %p223 = scmp.ne.s32.totalorder %s209, %s210
      %p224 = scmp.eq.s32.totalorder %s26, 1
      %p225 = por %p223, %p224
      %p227 = scmp.ne.s32.totalorder %s210, %s226
      %p228 = scmp.eq.s32.totalorder %s26, 0
      %p229 = por %p227, %p228
      %p230 = scmp.le.s32.totalorder 1, %s20
      %p231 = scmp.lt.s32.totalorder %s20, 3
      %p232 = pnand %p230, %p231
      %p233 = pneg %p232
      // Predicated region
      $region9: #{tpu_custom_call.1} parent=5 // pred_check
        _
      $region10: #{tpu_custom_call.1} parent=5 // pred_check_branch
        %235 = sbr.rel (%p232) target = $region12
      $region11: #{tpu_custom_call.1} parent=5 // pred_region
        %s236 = ssub.s32 %s20, 1
        // Predicated region
        $region13: #{tpu_custom_call.1} parent=11 // pred_check
          %p237 = pneg %p79
        $region14: #{tpu_custom_call.1} parent=11 // pred_check_branch
          %239 = sbr.rel (%p237) target = $region16
        $region15: #{tpu_custom_call.1} parent=11 // pred_region
          %s241 = ssub.s32 256, 256
          %242 = vsyncadd [#allocation7], %s241
          %s243 = sshll.u32 [#allocation6], 4
          %s244 = int_to_ptr.vmem [resolvable:$true] %s243
          %249 = dma.hbm_to_vmem [thread:$0]  %s1, 256, %s244, [#allocation7], 64, 64, 4
        $region16: #{tpu_custom_call.1} parent=11 // pred_fallthru
          _
        // Predicated region
        $region17: #{tpu_custom_call.1} parent=11 // pred_check
          %p250 = pneg %p100
        $region18: #{tpu_custom_call.1} parent=11 // pred_check_branch
          %252 = sbr.rel (%p250) target = $region20
        $region19: #{tpu_custom_call.1} parent=11 // pred_region
          _
        $region20: #{tpu_custom_call.1} parent=11 // pred_fallthru
          _
        // Predicated region
        $region21: #{tpu_custom_call.1} parent=11 // pred_check
          %p253 = pneg %p121
        $region22: #{tpu_custom_call.1} parent=11 // pred_check_branch
          %255 = sbr.rel (%p253) target = $region24
        $region23: #{tpu_custom_call.1} parent=11 // pred_region
          _
        $region24: #{tpu_custom_call.1} parent=11 // pred_fallthru
          _
        // Predicated region
        $region25: #{tpu_custom_call.1} parent=11 // pred_check
          %p256 = pneg %p142
        $region26: #{tpu_custom_call.1} parent=11 // pred_check_branch
          %258 = sbr.rel (%p256) target = $region28
        $region27: #{tpu_custom_call.1} parent=11 // pred_region
          %s260 = ssub.s32 16, 16
          %261 = vsyncadd [#allocation7], %s260
          %s263 = sshll.u32 [#allocation8], 4
          %s264 = int_to_ptr.vmem [resolvable:$true] %s263
          %266 = dma.hbm_to_vmem [thread:$0]  %s4, 16, %s264, [#allocation7]
        $region28: #{tpu_custom_call.1} parent=11 // pred_fallthru
          _
        // Predicated region
        $region29: #{tpu_custom_call.1} parent=11 // pred_check
          %p267 = pneg %p168
        $region30: #{tpu_custom_call.1} parent=11 // pred_check_branch
          %269 = sbr.rel (%p267) target = $region32
        $region31: #{tpu_custom_call.1} parent=11 // pred_region
          %p270 = scmp.lt.s32.totalorder %s30, 0
          %s271 = scalar_select %p270, %s30, 0
          %s272 = smul.addr %s271, 4
          %s273 = scalar_lea.vmem %s5, %s272
        $region32: #{tpu_custom_call.1} parent=11 // pred_fallthru
          _
        // Predicated region
        $region33: #{tpu_custom_call.1} parent=11 // pred_check
          %p274 = pneg %p194
        $region34: #{tpu_custom_call.1} parent=11 // pred_check_branch
          %276 = sbr.rel (%p274) target = $region36
        $region35: #{tpu_custom_call.1} parent=11 // pred_region
          %p277 = scmp.lt.s32.totalorder %s30, 0
          %s278 = scalar_select %p277, %s30, 0
          %s279 = scalar_lea.vmem %s6, %s278
        $region36: #{tpu_custom_call.1} parent=11 // pred_fallthru
          _
      $region12: #{tpu_custom_call.1} parent=5 // pred_fallthru
        _
      %p280 = scmp.lt.s32.totalorder %s20, 2
      // Predicated region
      $region37: #{tpu_custom_call.1} parent=5 // pred_check
        %p281 = pneg %p280
      $region38: #{tpu_custom_call.1} parent=5 // pred_check_branch
        %283 = sbr.rel (%p281) target = $region40
      $region39: #{tpu_custom_call.1} parent=5 // pred_region
        // Predicated region
        $region41: #{tpu_custom_call.1} parent=39 // pred_check
          %p284 = pneg %p52
        $region42: #{tpu_custom_call.1} parent=39 // pred_check_branch
          %286 = sbr.rel (%p284) target = $region44
        $region43: #{tpu_custom_call.1} parent=39 // pred_region
          %s287 = sand.u32 %s42, 1
          %s288 = scalar_lea.sflag [#allocation4], %s287
          %s289 = sand.u32 %s42, 1
          %s290 = smul.addr %s289, 8
          %s291 = scalar_lea.vmem [#allocation3], %s290
          %s293 = ssub.s32 128, 128
          %294 = vsyncadd %s288, %s293
          %s295 = smul.addr %s27, 128
          %s296 = scalar_lea.hbm %s0, %s295
          %s298 = sshll.u32 %s291, 4
          %s299 = int_to_ptr.vmem [resolvable:$true] %s298
          %301 = dma.hbm_to_vmem [thread:$0]  %s296, 128, %s299, %s288
        $region44: #{tpu_custom_call.1} parent=39 // pred_fallthru
          _
      $region40: #{tpu_custom_call.1} parent=5 // pred_fallthru
        _
      %p302 = scmp.le.s32.totalorder 1, %s20
      %p303 = scmp.lt.s32.totalorder %s20, 3
      %p304 = pnand %p302, %p303
      %p305 = pneg %p304
      // Predicated region
      $region45: #{tpu_custom_call.1} parent=5 // pred_check
        _
      $region46: #{tpu_custom_call.1} parent=5 // pred_check_branch
        %307 = sbr.rel (%p304) target = $region48
      $region47: #{tpu_custom_call.1} parent=5 // pred_region
        %s308 = ssub.s32 %s20, 1
        %s309 = sand.u32 %s45, 1
        %s310 = scalar_lea.sflag [#allocation4], %s309
        %s311 = sand.u32 %s45, 1
        %s312 = smul.addr %s311, 8
        %s313 = scalar_lea.vmem [#allocation3], %s312
        // Predicated region
        $region49: #{tpu_custom_call.1} parent=47 // pred_check
          %p314 = pneg %p58
        $region50: #{tpu_custom_call.1} parent=47 // pred_check_branch
          %316 = sbr.rel (%p314) target = $region52
        $region51: #{tpu_custom_call.1} parent=47 // pred_region
          %317 = dma.done %s310, 128
        $region52: #{tpu_custom_call.1} parent=47 // pred_fallthru
          _
        // Predicated region
        $region53: #{tpu_custom_call.1} parent=47 // pred_check
          %p318 = pneg %p79
        $region54: #{tpu_custom_call.1} parent=47 // pred_check_branch
          %320 = sbr.rel (%p318) target = $region56
        $region55: #{tpu_custom_call.1} parent=47 // pred_region
          %321 = dma.done [#allocation7], 256
        $region56: #{tpu_custom_call.1} parent=47 // pred_fallthru
          _
        // Predicated region
        $region57: #{tpu_custom_call.1} parent=47 // pred_check
          %p322 = pneg %p142
        $region58: #{tpu_custom_call.1} parent=47 // pred_check_branch
          %324 = sbr.rel (%p322) target = $region60
        $region59: #{tpu_custom_call.1} parent=47 // pred_region
          %325 = dma.done [#allocation7], 16
        $region60: #{tpu_custom_call.1} parent=47 // pred_fallthru
          _
        %s326 = sand.u32 %s45, 1
        %s327 = scalar_lea.sflag [#allocation4], %s326
        %s328 = sand.u32 %s45, 1
        %s329 = smul.addr %s328, 8
        %s330 = scalar_lea.vmem [#allocation3], %s329
        %p331 = pneg %p58
        %p332 = pneg %p55
        %p333 = pneg %p79
        %p334 = pneg %p76
        %p335 = pneg %p100
        %p336 = pneg %p97
        %p337 = pneg %p121
        %p338 = pneg %p118
        %p339 = pneg %p142
        %p340 = pneg %p139
        %p341 = scmp.lt.s32.totalorder %s30, 0
        %s342 = scalar_select %p341, %s30, 0
        %s343 = smul.addr %s342, 4
        %s344 = scalar_lea.vmem %s5, %s343
        %p345 = pneg %p168
        %p346 = pneg %p165
        %p347 = scmp.lt.s32.totalorder %s30, 0
        %s348 = scalar_select %p347, %s30, 0
        %s349 = scalar_lea.vmem %s6, %s348
        %p350 = pneg %p194
        %p351 = pneg %p191
        %p352 = pneg %p222
        %p353 = pneg %p219
        %s354 = sand.u32 %s209, 1
        %s355 = scalar_lea.sflag [#allocation5], %s354
        %s356 = sand.u32 %s209, 1
        %s357 = smul.addr %s356, 8
        %s358 = scalar_lea.vmem [#allocation9], %s357
        %p359 = scmp.lt.s32.totalorder %s30, 0
        %s360 = scalar_select %p359, %s30, 0
        %s361 = smul.addr %s360, 4
        %s362 = scalar_lea.vmem %s5, %s361
        %p363 = scmp.lt.s32.totalorder %s30, 0
        %s364 = scalar_select %p363, %s30, 0
        %s365 = scalar_lea.vmem %s6, %s364
        %p367 = scmp.eq.s32.totalorder %s30, 0
        // Predicated region
        $region61: #{tpu_custom_call.1} parent=47 // pred_check
          %p368 = pneg %p367
        $region62: #{tpu_custom_call.1} parent=47 // pred_check_branch
          %370 = sbr.rel (%p368) target = $region64
        $region63: #{tpu_custom_call.1} parent=47 // pred_region
          %v371 = vld [vmem:[%s313] sm:$0xff]
          %v372 = vpack.c.bf16 %v371, %v371
          %v373 = vld [vmem:[#allocation6] sm:$0xf]
          %v374 = vld [vmem:[#allocation6 + $0x4] sm:$0xf]
          %v375 = vld [vmem:[#allocation6 + $0x8] sm:$0xf]
          %v376 = vld [vmem:[#allocation6 + $0xc] sm:$0xf]
          %v377 = vld [vmem:[%s2] sm:$0x1]
          %v379 = vlaneseq
          %v380 = vshrl.u32 %v379, 7
          %v381 = vsub.s32 0, %v380
          %v382 = vrot.slane %v377, %v381
          %v388 = vunpack.c.l.b16 %v373
          %v389 = vunpack.c.l.b16 %v374
          %v390 = vunpack.c.l.b16 %v375
          %v391 = vunpack.c.l.b16 %v376
          %v392 = vpack.c.b16 %v389, %v388
          %v393 = vpack.c.b16 %v391, %v390
          %vm396 = vcmask 261120
          %v398 = vsel %vm396, %v372, 0
          %400 = vmatprep.subr.bf16.mxu0 0
          %401 = vmatpush1.bf16.msra.mxu0 %v392
          %402 = vmatprep.subr.bf16.mxu0 0
          %403 = vmatpush1.bf16.msra.mxu0 %v393
          %404 = vmatprep.subr.bf16.mxu0 0
          %405 = vmatpush1.bf16.msra.mxu0 0
          %406 = vmatprep.subr.bf16.mxu0 0
          %407 = vmatpush1.bf16.msra.mxu0 0
          %408 = vmatprep.subr.bf16.mxu0 0
          %409 = vmatpush1.bf16.msra.mxu0 0
          %410 = vmatprep.subr.bf16.mxu0 0
          %411 = vmatpush1.bf16.msra.mxu0 0
          %412 = vmatprep.subr.bf16.mxu0 0
          %413 = vmatpush1.bf16.msra.mxu0 0
          %414 = vmatprep.subr.bf16.mxu0 0
          %415 = vmatpush1.bf16.msra.mxu0 0
          %416 = vmatprep.subr.bf16.mxu0 0
          %417 = vmatpush1.bf16.msra.mxu0 0
          %418 = vmatprep.subr.bf16.mxu0 0
          %419 = vmatpush1.bf16.msra.mxu0 0
          %420 = vmatprep.subr.bf16.mxu0 0
          %421 = vmatpush1.bf16.msra.mxu0 0
          %422 = vmatprep.subr.bf16.mxu0 0
          %423 = vmatpush1.bf16.msra.mxu0 0
          %424 = vmatprep.subr.bf16.mxu0 0
          %425 = vmatpush1.bf16.msra.mxu0 0
          %426 = vmatprep.subr.bf16.mxu0 0
          %427 = vmatpush1.bf16.msra.mxu0 0
          %428 = vmatprep.subr.bf16.mxu0 0
          %429 = vmatpush1.bf16.msra.mxu0 0
          %430 = vmatprep.subr.bf16.mxu0 0
          %431 = vmatpush1.bf16.msra.mxu0 0
          %432 = vmatprep.mubr.bf16.mxu0 0
          %433 = vmatmul.mubr.bf16.gmra.mrb[0].mxu0 %v398
          %v434 = vpop.f32.mrb[0].mxu0
          %v435 = vadd.f32 %v382, %v434
          %v436 = vpop.f32.mrb[0].mxu0
          %v437 = vpop.f32.mrb[0].mxu0
          %v438 = vpop.f32.mrb[0].mxu0
          %439 = vdwg.mxu0
          %v440 = vmul.f32 %v435, 0.5
          %v441 = vmul.f32 %v435, 0.70710677
          %v442 = verf.f32.pop %v441
          %v443 = vadd.f32 %v442, 1.0
          %v444 = vmul.f32 %v440, %v443
          %v445 = vsel %vm396, %v444, 0.0
          %446 = vadd.xlane.f32.xlu0 %v445
          %v447 = vpop.xlane.xlu0 %446
          %v448 = vrcp.pop 32.0
          %v449 = vmul.f32 %v447, %v448
          %v450 = vsub.f32 %v444, %v449
          %v451 = vmul.f32 %v450, %v450
          %v452 = vsel %vm396, %v451, 0.0
          %453 = vadd.xlane.f32.xlu0 %v452
          %v454 = vpop.xlane.xlu0 %453
          %v455 = vmul.f32 %v454, %v448
          %v456 = vadd.f32 %v455, 1e-05
          %v457 = vrsqrt.pop %v456
          %v458 = vmul.f32 %v450, %v457
          %v459 = vld [vmem:[%s3] sm:$0x1]
          %v461 = vlaneseq
          %v462 = vshrl.u32 %v461, 7
          %v463 = vsub.s32 0, %v462
          %v464 = vrot.slane %v459, %v463
          %v466 = vmul.f32 %v458, %v464
          %v467 = vld [vmem:[#allocation8] sm:$0x1]
          %v469 = vlaneseq
          %v470 = vshrl.u32 %v469, 7
          %v471 = vsub.s32 0, %v470
          %v472 = vrot.slane %v467, %v471
          %v474 = vadd.f32 %v466, %v472
          %v475 = vpack.c.bf16 %v474, %v474
          %vm476 = vcmask 257024
          %477 = vst.msk [vmem:[#allocation2] sm:$0xf] %vm476, %v475
        $region64: #{tpu_custom_call.1} parent=47 // pred_fallthru
          _
        %v478 = vld [vmem:[#allocation2] sm:$0xf]
        %v479 = vld [vmem:[%s362] sm:$0xf]
        %v480 = vld [vmem:[%s362 + $0x4] sm:$0xf]
        %v481 = vld [vmem:[%s362 + $0x8] sm:$0xf]
        %v482 = vld [vmem:[%s362 + $0xc] sm:$0xf]
        %v483 = vld [vmem:[%s365] sm:$0x1]
        %v485 = vlaneseq
        %v486 = vshrl.u32 %v485, 7
        %v487 = vsub.s32 0, %v486
        %v488 = vrot.slane %v483, %v487
        %v494 = vunpack.c.l.b16 %v479
        %v495 = vunpack.c.l.b16 %v480
        %v496 = vunpack.c.l.b16 %v481
        %v497 = vunpack.c.l.b16 %v482
        %v498 = vpack.c.b16 %v495, %v494
        %v499 = vpack.c.b16 %v497, %v496
        %vm502 = vcmask 261120
        %v504 = vsel %vm502, %v478, 0
        %506 = vmatprep.subr.bf16.mxu0 0
        %507 = vmatpush1.bf16.msra.mxu0 %v498
        %508 = vmatprep.subr.bf16.mxu0 0
        %509 = vmatpush1.bf16.msra.mxu0 %v499
        %510 = vmatprep.subr.bf16.mxu0 0
        %511 = vmatpush1.bf16.msra.mxu0 0
        %512 = vmatprep.subr.bf16.mxu0 0
        %513 = vmatpush1.bf16.msra.mxu0 0
        %514 = vmatprep.subr.bf16.mxu0 0
        %515 = vmatpush1.bf16.msra.mxu0 0
        %516 = vmatprep.subr.bf16.mxu0 0
        %517 = vmatpush1.bf16.msra.mxu0 0
        %518 = vmatprep.subr.bf16.mxu0 0
        %519 = vmatpush1.bf16.msra.mxu0 0
        %520 = vmatprep.subr.bf16.mxu0 0
        %521 = vmatpush1.bf16.msra.mxu0 0
        %522 = vmatprep.subr.bf16.mxu0 0
        %523 = vmatpush1.bf16.msra.mxu0 0
        %524 = vmatprep.subr.bf16.mxu0 0
        %525 = vmatpush1.bf16.msra.mxu0 0
        %526 = vmatprep.subr.bf16.mxu0 0
        %527 = vmatpush1.bf16.msra.mxu0 0
        %528 = vmatprep.subr.bf16.mxu0 0
        %529 = vmatpush1.bf16.msra.mxu0 0
        %530 = vmatprep.subr.bf16.mxu0 0
        %531 = vmatpush1.bf16.msra.mxu0 0
        %532 = vmatprep.subr.bf16.mxu0 0
        %533 = vmatpush1.bf16.msra.mxu0 0
        %534 = vmatprep.subr.bf16.mxu0 0
        %535 = vmatpush1.bf16.msra.mxu0 0
        %536 = vmatprep.subr.bf16.mxu0 0
        %537 = vmatpush1.bf16.msra.mxu0 0
        %538 = vmatprep.mubr.bf16.mxu0 0
        %539 = vmatmul.mubr.bf16.gmra.mrb[0].mxu0 %v504
        %v540 = vpop.f32.mrb[0].mxu0
        %v541 = vadd.f32 %v488, %v540
        %v542 = vpop.f32.mrb[0].mxu0
        %v543 = vpop.f32.mrb[0].mxu0
        %v544 = vpop.f32.mrb[0].mxu0
        %545 = vdwg.mxu0
        %546 = vst [vmem:[%s358] sm:$0xff] %v541
        %s547 = sand.u32 %s209, 1
        %s548 = scalar_lea.sflag [#allocation5], %s547
        %s549 = sand.u32 %s209, 1
        %s550 = smul.addr %s549, 8
        %s551 = scalar_lea.vmem [#allocation9], %s550
        // Predicated region
        $region65: #{tpu_custom_call.1} parent=47 // pred_check
          %p552 = pneg %p219
        $region66: #{tpu_custom_call.1} parent=47 // pred_check_branch
          %554 = sbr.rel (%p552) target = $region68
        $region67: #{tpu_custom_call.1} parent=47 // pred_region
          %s556 = ssub.s32 128, 128
          %557 = vsyncadd %s548, %s556
          %s558 = sadd.s32 %s30, %s29
          %s559 = smul.addr %s558, 128
          %s560 = scalar_lea.hbm %s7, %s559
          %s562 = sshll.u32 %s551, 4
          %s563 = int_to_ptr.vmem [resolvable:$true] %s562
          %565 = dma.vmem_to_hbm [thread:$0]  %s563, 128, %s560, %s548
        $region68: #{tpu_custom_call.1} parent=47 // pred_fallthru
          _
      $region48: #{tpu_custom_call.1} parent=5 // pred_fallthru
        _
      %p566 = scmp.le.s32.totalorder 2, %s20
      // Predicated region
      $region69: #{tpu_custom_call.1} parent=5 // pred_check
        %p567 = pneg %p566
      $region70: #{tpu_custom_call.1} parent=5 // pred_check_branch
        %569 = sbr.rel (%p567) target = $region72
      $region71: #{tpu_custom_call.1} parent=5 // pred_region
        %s570 = ssub.s32 %s20, 2
        // Predicated region
        $region73: #{tpu_custom_call.1} parent=71 // pred_check
          %p571 = pneg %p225
        $region74: #{tpu_custom_call.1} parent=71 // pred_check_branch
          %573 = sbr.rel (%p571) target = $region76
        $region75: #{tpu_custom_call.1} parent=71 // pred_region
          %s574 = sand.u32 %s210, 1
          %s575 = scalar_lea.sflag [#allocation5], %s574
          %s576 = sand.u32 %s210, 1
          %s577 = smul.addr %s576, 8
          %s578 = scalar_lea.vmem [#allocation9], %s577
          %579 = dma.done %s575, 128
        $region76: #{tpu_custom_call.1} parent=71 // pred_fallthru
          _
      $region72: #{tpu_custom_call.1} parent=5 // pred_fallthru
        _
    $region6: #{tpu_custom_call.1} parent=1 // loop_footer
      %s24 = sadd.s32 1, %s20
    $region7: #{tpu_custom_call.1} parent=1 // loop_footer_branch
      %19 = sbr.rel target = $region3
    $region8: #{tpu_custom_call.1} parent=1 // loop_exit
      _
    %580 = vsyncpa [#allocation4], 1
    %s581 = scalar_lea.sflag [#allocation4], 1
    %582 = vsyncpa %s581, 1
    %583 = vsyncpa [#allocation7], 1
    %584 = vsyncpa [#allocation5], 1
    %s585 = scalar_lea.sflag [#allocation5], 1
    %586 = vsyncpa %s585, 1

</llo_original>
